<compile_context>
chip_gen: v5e
topology: v5e:2x2
jax: 0.10.0
libtpu: 0.0.40
codegen_flags: <defaults>
</compile_context>

<pallas_src>
import jax
import jax.numpy as jnp
from jax.experimental import pallas as pl
from jax.experimental.pallas import tpu as pltpu


def _round_up(x, m):
    return (x + m - 1) // m * m


def _one_to_one_linear_kernel(x_ref, w_ref, b_ref, o_ref, acc_ref):
    # x_ref:   (Lb, TM, TK)   row/K tile of the Lb modules in this group
    # w_ref:   (Lb, TK, TN)   weight K/N tile of the Lb modules
    # b_ref:   (Lb, 1,  TN)   bias N tile
    # o_ref:   (Lb, TM, TN)   output tile (resident across the K axis)
    # acc_ref: (Lb, TM, TN)   f32 accumulator scratch
    k = pl.program_id(3)

    @pl.when(k == 0)
    def _():
        acc_ref[...] = jnp.zeros_like(acc_ref)

    # Static unroll over the modules folded into this grid step.
    for i in range(x_ref.shape[0]):
        acc_ref[i] += jnp.dot(x_ref[i], w_ref[i],
                              preferred_element_type=jnp.float32)

    @pl.when(k == pl.num_programs(3) - 1)
    def _():
        o_ref[...] = (acc_ref[...] + b_ref[...].astype(jnp.float32)
                      ).astype(o_ref.dtype)


def _choose_tiles(L, M, Din, Dout, itemsize, budget_bytes=36 << 20):
    """Pick (Lb, TM, TK, TN) so the double-buffered footprint fits budget."""
    sub = {4: 8, 2: 16, 1: 32}.get(itemsize, 8)   # sublane multiple per dtype
    Din_p = _round_up(Din, 128)
    Dout_p = _round_up(Dout, 128)

    def pick_block(d):
        # Prefer 512/256-wide lane blocks (v6e/v7x MXU passes are 256 wide)
        # when they divide the 128-padded extent; otherwise 128.
        for cand in (512, 256, 128):
            if d % cand == 0:
                return cand
        return d

    TK = pick_block(Din_p)
    TN = pick_block(Dout_p)

    M_rows = _round_up(M, sub)
    tm_target = 1024 if max(Din_p, Dout_p) <= 1024 else 512
    TM = _round_up(min(tm_target, M_rows), sub)

    def footprint(lb, tm, tk, tn):
        x_t = lb * tm * tk * itemsize
        w_t = lb * tk * tn * itemsize
        b_t = lb * 8 * tn * itemsize
        o_t = lb * tm * tn * itemsize
        acc = lb * tm * tn * 4
        return 2 * (x_t + w_t + b_t + o_t) + acc   # double-buffered I/O + acc

    # Fold modules into one grid step when per-module M tiles are tiny.
    Lb = 1
    if L > 1 and M_rows <= 256:
        for d in range(1, L + 1):
            if L % d == 0 and d * TM <= 1024 and \
                    footprint(d, TM, TK, TN) <= budget_bytes:
                Lb = d

    # Shrink until the tile footprint fits the VMEM budget.
    while footprint(Lb, TM, TK, TN) > budget_bytes:
        if TM > sub:
            TM = max(sub, _round_up(TM // 2, sub))
        elif TN > 128:
            TN //= 2
        elif TK > 128:
            TK //= 2
        else:
            break

    return Lb, TM, TK, TN, Din_p, Dout_p, footprint(Lb, TM, TK, TN)


def _stacked_linear(x, w, b, *, compute_dtype=None):
    """x: [L, M, Din], w: [L, Din, Dout], b: [L, Dout] -> [L, M, Dout]."""
    L, M, Din = x.shape
    Lw, Din_w, Dout = w.shape
    assert L == Lw and Din == Din_w and b.shape == (L, Dout)

    out_dtype = x.dtype
    if compute_dtype is not None:
        x = x.astype(compute_dtype)
        w = w.astype(compute_dtype)
        # bias stays in its own dtype; it is added in f32 inside the kernel

    itemsize = jnp.dtype(x.dtype).itemsize
    Lb, TM, TK, TN, _, _, fp_bytes = _choose_tiles(L, M, Din, Dout, itemsize)

    Mp = _round_up(M, TM)
    Din_pp = _round_up(_round_up(Din, 128), TK)
    Dout_pp = _round_up(_round_up(Dout, 128), TN)

    # Pad only the axes that need it (Din must be zero-padded for correctness;
    # M / Dout padding is sliced away afterwards).
    xp = x if (Mp == M and Din_pp == Din) else jnp.pad(
        x, ((0, 0), (0, Mp - M), (0, Din_pp - Din)))
    wp = w if (Din_pp == Din and Dout_pp == Dout) else jnp.pad(
        w, ((0, 0), (0, Din_pp - Din), (0, Dout_pp - Dout)))
    b3 = b.reshape(L, 1, Dout)
    bp = b3 if Dout_pp == Dout else jnp.pad(
        b3, ((0, 0), (0, 0), (0, Dout_pp - Dout)))

    grid = (L // Lb, Mp // TM, Dout_pp // TN, Din_pp // TK)

    vmem_limit = int(min(max(fp_bytes * 5 // 4 + (8 << 20), 32 << 20), 64 << 20))

    out = pl.pallas_call(
        _one_to_one_linear_kernel,
        out_shape=jax.ShapeDtypeStruct((L, Mp, Dout_pp), out_dtype),
        grid_spec=pltpu.PrefetchScalarGridSpec(
            num_scalar_prefetch=0,
            grid=grid,
            in_specs=[
                # x row/K tile of module group g
                pl.BlockSpec((Lb, TM, TK), lambda g, m, n, k: (g, m, k)),
                # weight K/N tile of module group g (independent of m)
                pl.BlockSpec((Lb, TK, TN), lambda g, m, n, k: (g, k, n)),
                # bias N tile
                pl.BlockSpec((Lb, 1, TN), lambda g, m, n, k: (g, 0, n)),
            ],
            out_specs=pl.BlockSpec((Lb, TM, TN), lambda g, m, n, k: (g, m, n)),
            scratch_shapes=[pltpu.VMEM((Lb, TM, TN), jnp.float32)],
        ),
        compiler_params=pltpu.CompilerParams(
            # Leading module axis parallel (megacore split lands on disjoint
            # weights); the trailing K axis is the reduction -> arbitrary.
            dimension_semantics=("parallel", "parallel", "parallel", "arbitrary"),
            vmem_limit_bytes=vmem_limit,
        ),
    )(xp, wp, bp)

    if Mp != M or Dout_pp != Dout:
        out = out[:, :M, :Dout]
    return out


def apply_one_to_one(in_list, weight_list, bias_list, *, compute_dtype=None):
    """Pallas equivalent of ApplyOneToOne.forward with Linear sub-modules.

    out_list[i] = in_list[i] @ weight_list[i] + bias_list[i]
    """
    assert len(in_list) == len(weight_list) == len(bias_list)
    # TODO(synk): only Linear sub-modules are supported; arbitrary
    # build_model(cfg) sub-modules have no generic Pallas translation.

    n = len(in_list)
    # Bucket modules by (shape, dtype) and issue one stacked call per bucket.
    buckets = {}
    for i in range(n):
        key = (in_list[i].shape, weight_list[i].shape, bias_list[i].shape,
               str(in_list[i].dtype), str(weight_list[i].dtype),
               str(bias_list[i].dtype))
        buckets.setdefault(key, []).append(i)

    out_list = [None] * n
    for idxs in buckets.values():
        xs = jnp.stack([in_list[i] for i in idxs])
        ws = jnp.stack([weight_list[i] for i in idxs])
        bs = jnp.stack([bias_list[i] for i in idxs])
        res = _stacked_linear(xs, ws, bs, compute_dtype=compute_dtype)
        for j, i in enumerate(idxs):
            out_list[i] = res[j]
    return out_list


if __name__ == "__main__":
    key = jax.random.PRNGKey(0)

    def make_case(keys, M, Din, Dout):
        x = jax.random.normal(keys[0], (M, Din), dtype=jnp.float32)
        w = 0.1 * jax.random.normal(keys[1], (Din, Dout), dtype=jnp.float32)
        b = jax.random.normal(keys[2], (Dout,), dtype=jnp.float32)
        return x, w, b

    # --- Uniform-shape list: 3 sub-modules, 16 rows, 32 -> 32 -----------------
    L = 3
    keys = jax.random.split(key, 3 * L + 6)
    in_list, w_list, b_list = [], [], []
    for i in range(L):
        x, w, b = make_case(keys[3 * i:3 * i + 3], 16, 32, 32)
        in_list.append(x); w_list.append(w); b_list.append(b)

    # --- Append two heterogeneous-shape modules (exercise bucketing) ---------
    for j in range(2):
        x, w, b = make_case(keys[3 * L + 3 * j:3 * L + 3 * j + 3], 24, 48, 64)
        in_list.append(x); w_list.append(w); b_list.append(b)

    out_list = apply_one_to_one(in_list, w_list, b_list)
    out_list = [jax.block_until_ready(o) for o in out_list]

    ref_list = [
        jnp.dot(x, w, precision=jax.lax.Precision.HIGHEST) + b
        for x, w, b in zip(in_list, w_list, b_list)
    ]

    for o, r, x in zip(out_list, ref_list, in_list):
        assert o.shape == r.shape, (o.shape, r.shape)
        assert o.dtype == x.dtype, o.dtype
        assert jnp.allclose(o, r, rtol=2e-2, atol=2e-2), \
            float(jnp.max(jnp.abs(o - r)))

    print("KERNEL_OK")
</pallas_src>

<mosaic_0001>
module attributes {stable_mosaic.version = 11 : i64} {
  func.func @_one_to_one_linear_kernel(%arg0: i32, %arg1: i32, %arg2: i32, %arg3: i32, %arg4: memref<3x16x128xf32, #tpu.memory_space<vmem>>, %arg5: memref<3x128x128xf32, #tpu.memory_space<vmem>>, %arg6: memref<3x1x128xf32, #tpu.memory_space<vmem>>, %arg7: memref<3x16x128xf32, #tpu.memory_space<vmem>>, %arg8: memref<3x16x128xf32, #tpu.memory_space<vmem>>) attributes {dimension_semantics = [#tpu.dimension_semantics<parallel>, #tpu.dimension_semantics<parallel>, #tpu.dimension_semantics<parallel>, #tpu.dimension_semantics<arbitrary>], iteration_bounds = array<i64: 1, 1, 1, 1>, scalar_prefetch = 0 : i64, scratch_operands = 1 : i64, tpu.core_type = #tpu.core_type<tc>, window_params = [{transform_indices = @transform_0, window_bounds = array<i64: 3, 16, 128>}, {transform_indices = @transform_1, window_bounds = array<i64: 3, 128, 128>}, {transform_indices = @transform_2, window_bounds = array<i64: 3, 1, 128>}, {transform_indices = @transform_3, window_bounds = array<i64: 3, 16, 128>}]} {
    %c0_i32 = arith.constant 0 : i32
    %0 = arith.cmpi eq, %arg3, %c0_i32 : i32
    %1 = arith.extui %0 : i1 to i32
    %c0_i32_0 = arith.constant 0 : i32
    %2 = arith.cmpi ne, %1, %c0_i32_0 : i32
    scf.if %2 {
      %cst_38 = arith.constant 0.000000e+00 : f32
      %39 = vector.broadcast %cst_38 : f32 to vector<3x16x128xf32>
      %c0_39 = arith.constant 0 : index
      %c0_40 = arith.constant 0 : index
      %c0_41 = arith.constant 0 : index
      %40 = vector.load %arg8[%c0_39, %c0_40, %c0_41] : memref<3x16x128xf32, #tpu.memory_space<vmem>>, vector<3x16x128xf32>
      tpu.vector_store %arg8[%c0_39, %c0_40, %c0_41], %39 {strides = array<i32>} : memref<3x16x128xf32, #tpu.memory_space<vmem>>, vector<3x16x128xf32>,
    } else {
    }
    %c0 = arith.constant 0 : index
    %c0_1 = arith.constant 0 : index
    %c0_2 = arith.constant 0 : index
    %3 = vector.load %arg8[%c0, %c0_1, %c0_2] : memref<3x16x128xf32, #tpu.memory_space<vmem>>, vector<1x16x128xf32>
    %4 = vector.shape_cast %3 : vector<1x16x128xf32> to vector<16x128xf32>
    %c0_3 = arith.constant 0 : index
    %c0_4 = arith.constant 0 : index
    %c0_5 = arith.constant 0 : index
    %5 = vector.load %arg4[%c0_3, %c0_4, %c0_5] : memref<3x16x128xf32, #tpu.memory_space<vmem>>, vector<1x16x128xf32>
    %6 = vector.shape_cast %5 : vector<1x16x128xf32> to vector<16x128xf32>
    %c0_6 = arith.constant 0 : index
    %c0_7 = arith.constant 0 : index
    %c0_8 = arith.constant 0 : index
    %7 = vector.load %arg5[%c0_6, %c0_7, %c0_8] : memref<3x128x128xf32, #tpu.memory_space<vmem>>, vector<1x128x128xf32>
    %8 = vector.shape_cast %7 : vector<1x128x128xf32> to vector<128x128xf32>
    %cst = arith.constant dense<0.000000e+00> : vector<16x128xf32>
    %9 = tpu.matmul %6, %8, %cst {dimension_numbers = #tpu.dot_dimension_numbers<[1], [0], [0], [1], [0, 0, 1, 1], [], []>} : vector<16x128xf32>, vector<128x128xf32>, vector<16x128xf32> -> vector<16x128xf32>
    %10 = arith.addf %4, %9 : vector<16x128xf32>
    %c0_9 = arith.constant 0 : index
    %c0_10 = arith.constant 0 : index
    %c0_11 = arith.constant 0 : index
    %11 = vector.load %arg8[%c0_9, %c0_10, %c0_11] : memref<3x16x128xf32, #tpu.memory_space<vmem>>, vector<1x16x128xf32>
    %12 = vector.shape_cast %11 : vector<1x16x128xf32> to vector<16x128xf32>
    %13 = vector.shape_cast %10 : vector<16x128xf32> to vector<1x16x128xf32>
    tpu.vector_store %arg8[%c0_9, %c0_10, %c0_11], %13 {strides = array<i32>} : memref<3x16x128xf32, #tpu.memory_space<vmem>>, vector<1x16x128xf32>,
    %c1 = arith.constant 1 : index
    %c0_12 = arith.constant 0 : index
    %c0_13 = arith.constant 0 : index
    %14 = vector.load %arg8[%c1, %c0_12, %c0_13] : memref<3x16x128xf32, #tpu.memory_space<vmem>>, vector<1x16x128xf32>
    %15 = vector.shape_cast %14 : vector<1x16x128xf32> to vector<16x128xf32>
    %c1_14 = arith.constant 1 : index
    %c0_15 = arith.constant 0 : index
    %c0_16 = arith.constant 0 : index
    %16 = vector.load %arg4[%c1_14, %c0_15, %c0_16] : memref<3x16x128xf32, #tpu.memory_space<vmem>>, vector<1x16x128xf32>
    %17 = vector.shape_cast %16 : vector<1x16x128xf32> to vector<16x128xf32>
    %c1_17 = arith.constant 1 : index
    %c0_18 = arith.constant 0 : index
    %c0_19 = arith.constant 0 : index
    %18 = vector.load %arg5[%c1_17, %c0_18, %c0_19] : memref<3x128x128xf32, #tpu.memory_space<vmem>>, vector<1x128x128xf32>
    %19 = vector.shape_cast %18 : vector<1x128x128xf32> to vector<128x128xf32>
    %cst_20 = arith.constant dense<0.000000e+00> : vector<16x128xf32>
    %20 = tpu.matmul %17, %19, %cst_20 {dimension_numbers = #tpu.dot_dimension_numbers<[1], [0], [0], [1], [0, 0, 1, 1], [], []>} : vector<16x128xf32>, vector<128x128xf32>, vector<16x128xf32> -> vector<16x128xf32>
    %21 = arith.addf %15, %20 : vector<16x128xf32>
    %c1_21 = arith.constant 1 : index
    %c0_22 = arith.constant 0 : index
    %c0_23 = arith.constant 0 : index
    %22 = vector.load %arg8[%c1_21, %c0_22, %c0_23] : memref<3x16x128xf32, #tpu.memory_space<vmem>>, vector<1x16x128xf32>
    %23 = vector.shape_cast %22 : vector<1x16x128xf32> to vector<16x128xf32>
    %24 = vector.shape_cast %21 : vector<16x128xf32> to vector<1x16x128xf32>
    tpu.vector_store %arg8[%c1_21, %c0_22, %c0_23], %24 {strides = array<i32>} : memref<3x16x128xf32, #tpu.memory_space<vmem>>, vector<1x16x128xf32>,
    %c2 = arith.constant 2 : index
    %c0_24 = arith.constant 0 : index
    %c0_25 = arith.constant 0 : index
    %25 = vector.load %arg8[%c2, %c0_24, %c0_25] : memref<3x16x128xf32, #tpu.memory_space<vmem>>, vector<1x16x128xf32>
    %26 = vector.shape_cast %25 : vector<1x16x128xf32> to vector<16x128xf32>
    %c2_26 = arith.constant 2 : index
    %c0_27 = arith.constant 0 : index
    %c0_28 = arith.constant 0 : index
    %27 = vector.load %arg4[%c2_26, %c0_27, %c0_28] : memref<3x16x128xf32, #tpu.memory_space<vmem>>, vector<1x16x128xf32>
    %28 = vector.shape_cast %27 : vector<1x16x128xf32> to vector<16x128xf32>
    %c2_29 = arith.constant 2 : index
    %c0_30 = arith.constant 0 : index
    %c0_31 = arith.constant 0 : index
    %29 = vector.load %arg5[%c2_29, %c0_30, %c0_31] : memref<3x128x128xf32, #tpu.memory_space<vmem>>, vector<1x128x128xf32>
    %30 = vector.shape_cast %29 : vector<1x128x128xf32> to vector<128x128xf32>
    %cst_32 = arith.constant dense<0.000000e+00> : vector<16x128xf32>
    %31 = tpu.matmul %28, %30, %cst_32 {dimension_numbers = #tpu.dot_dimension_numbers<[1], [0], [0], [1], [0, 0, 1, 1], [], []>} : vector<16x128xf32>, vector<128x128xf32>, vector<16x128xf32> -> vector<16x128xf32>
    %32 = arith.addf %26, %31 : vector<16x128xf32>
    %c2_33 = arith.constant 2 : index
    %c0_34 = arith.constant 0 : index
    %c0_35 = arith.constant 0 : index
    %33 = vector.load %arg8[%c2_33, %c0_34, %c0_35] : memref<3x16x128xf32, #tpu.memory_space<vmem>>, vector<1x16x128xf32>
    %34 = vector.shape_cast %33 : vector<1x16x128xf32> to vector<16x128xf32>
    %35 = vector.shape_cast %32 : vector<16x128xf32> to vector<1x16x128xf32>
    tpu.vector_store %arg8[%c2_33, %c0_34, %c0_35], %35 {strides = array<i32>} : memref<3x16x128xf32, #tpu.memory_space<vmem>>, vector<1x16x128xf32>,
    %c0_i32_36 = arith.constant 0 : i32
    %36 = arith.cmpi eq, %arg3, %c0_i32_36 : i32
    %37 = arith.extui %36 : i1 to i32
    %c0_i32_37 = arith.constant 0 : i32
    %38 = arith.cmpi ne, %37, %c0_i32_37 : i32
    scf.if %38 {
      %c0_38 = arith.constant 0 : index
      %c0_39 = arith.constant 0 : index
      %c0_40 = arith.constant 0 : index
      %39 = vector.load %arg8[%c0_38, %c0_39, %c0_40] : memref<3x16x128xf32, #tpu.memory_space<vmem>>, vector<3x16x128xf32>
      %c0_41 = arith.constant 0 : index
      %c0_42 = arith.constant 0 : index
      %c0_43 = arith.constant 0 : index
      %40 = vector.load %arg6[%c0_41, %c0_42, %c0_43] : memref<3x1x128xf32, #tpu.memory_space<vmem>>, vector<3x1x128xf32>
      %41 = vector.broadcast %40 : vector<3x1x128xf32> to vector<3x16x128xf32>
      %42 = arith.addf %39, %41 : vector<3x16x128xf32>
      %c0_44 = arith.constant 0 : index
      %c0_45 = arith.constant 0 : index
      %c0_46 = arith.constant 0 : index
      %43 = vector.load %arg7[%c0_44, %c0_45, %c0_46] : memref<3x16x128xf32, #tpu.memory_space<vmem>>, vector<3x16x128xf32>
      tpu.vector_store %arg7[%c0_44, %c0_45, %c0_46], %42 {strides = array<i32>} : memref<3x16x128xf32, #tpu.memory_space<vmem>>, vector<3x16x128xf32>,
    } else {
    }
    return
  }
  func.func @transform_0(%arg0: i32, %arg1: i32, %arg2: i32, %arg3: i32) -> (i32, i32, i32) {
    %c0_i32 = arith.constant 0 : i32
    return %arg0, %arg1, %arg3 : i32, i32, i32
  }
  func.func @transform_1(%arg0: i32, %arg1: i32, %arg2: i32, %arg3: i32) -> (i32, i32, i32) {
    %c0_i32 = arith.constant 0 : i32
    return %arg0, %arg3, %arg2 : i32, i32, i32
  }
  func.func @transform_2(%arg0: i32, %arg1: i32, %arg2: i32, %arg3: i32) -> (i32, i32, i32) {
    %c0_i32 = arith.constant 0 : i32
    %c0_i32_0 = arith.constant 0 : i32
    return %arg0, %c0_i32, %arg2 : i32, i32, i32
  }
  func.func @transform_3(%arg0: i32, %arg1: i32, %arg2: i32, %arg3: i32) -> (i32, i32, i32) {
    %c0_i32 = arith.constant 0 : i32
    return %arg0, %arg1, %arg2 : i32, i32, i32
  }
}

</mosaic_0001>

<llo_original>
// kernel: tpu_custom_call.1
$region0: #{tpu_custom_call.1}
  #allocation0 [shape = 'u32[]', space=smem, size = 0x4, offset = 0x4, fixed_abs, tag = 'smem constant byte address 0x4 - core index']
  #allocation1 [shape = 'u32[72,128]{1,0:T(1,128)}', space=vmem, size = 0x9000, scoped, tag = 'internal scratch']
  #allocation2 [shape = 'f32[3,16,128]{2,1,0:T(8,128)}', space=vmem, size = 0x6000, scoped, tag = 'scratch operand']
  %s0 = inlined_call_operand.hbm [shape: f32[3,16,128], index: 0, kind: input, shape index: {}]
  %s1 = inlined_call_operand.hbm [shape: f32[3,128,128], index: 1, kind: input, shape index: {}]
  %s2 = inlined_call_operand.hbm [shape: f32[3,1,128], index: 2, kind: input, shape index: {}]
  %s3 = inlined_call_operand.hbm [shape: f32[3,16,128], index: 3, kind: output, shape index: {}]
  %s4 = sld [smem:[#allocation0]]
  $region42: #{tpu_custom_call.1} parent=0
    _
  %s6 = ssub.s32 1, %s4
  %s7 = scalar_select 0, %s6, %s4
  $region1: #{tpu_custom_call.1} parent=0
    #allocation3 [shape = 'u8[24576]{0}', space=vmem, size = 0x6000, scoped, tag = 'input window, operand 0, single buffered']
    #allocation4 [shape = 's32[1]{0}', space=sflag, size = 0x4, scoped, tag = 'scoped memory for tpu_custom_call.1']
    #allocation5 [shape = 's32[1]{0}', space=sflag, size = 0x4, scoped, tag = 'scoped memory for tpu_custom_call.1']
    #allocation6 [shape = 'u8[196608]{0}', space=vmem, size = 0x30000, scoped, tag = 'input window, operand 1, single buffered']
    #allocation7 [shape = 's32[1]{0}', space=sflag, size = 0x4, scoped, tag = 'scoped memory for tpu_custom_call.1']
    #allocation8 [shape = 'u8[1536]{0}', space=vmem, size = 0x800, scoped, tag = 'input window, operand 2, single buffered']
    #allocation9 [shape = 'u8[24576]{0}', space=vmem, size = 0x6000, scoped, tag = 'output window, operand 0, single buffered']
    %8 = vsyncpa [#allocation4], 0
    %9 = vsyncpa [#allocation7], 0
    %10 = vsyncpa [#allocation5], 0
    // Predicated region
    $region2: #{tpu_custom_call.1} parent=1 // pred_check
      _
    $region3: #{tpu_custom_call.1} parent=1 // pred_check_branch
      %12 = sbr.rel (0) target = $region5
    $region4: #{tpu_custom_call.1} parent=1 // pred_region
      %14 = vsyncadd [#allocation4], 0
      %s15 = sshll.u32 %s0, 4
      %s16 = int_to_ptr.hbm [resolvable:$true] %s15
      %s17 = sshll.u32 [#allocation3], 4
      %s18 = int_to_ptr.vmem [resolvable:$true] %s17
      %23 = dma.hbm_to_vmem [thread:$0]  %s16, 768, %s18, [#allocation4], 128, 128, 8
    $region5: #{tpu_custom_call.1} parent=1 // pred_fallthru
      _
    // Predicated region
    $region6: #{tpu_custom_call.1} parent=1 // pred_check
      _
    $region7: #{tpu_custom_call.1} parent=1 // pred_check_branch
      %25 = sbr.rel (0) target = $region9
    $region8: #{tpu_custom_call.1} parent=1 // pred_region
      %27 = vsyncadd [#allocation7], 0
      %s28 = sshll.u32 %s1, 4
      %s29 = int_to_ptr.hbm [resolvable:$true] %s28
      %s30 = sshll.u32 [#allocation6], 4
      %s31 = int_to_ptr.vmem [resolvable:$true] %s30
      %36 = dma.hbm_to_vmem [thread:$0]  %s29, 6144, %s31, [#allocation7], 128, 128, 8
    $region9: #{tpu_custom_call.1} parent=1 // pred_fallthru
      _
    // Predicated region
    $region10: #{tpu_custom_call.1} parent=1 // pred_check
      _
    $region11: #{tpu_custom_call.1} parent=1 // pred_check_branch
      %38 = sbr.rel (0) target = $region13
    $region12: #{tpu_custom_call.1} parent=1 // pred_region
      %40 = vsyncadd [#allocation7], 0
      %s41 = sshll.u32 %s2, 4
      %s42 = int_to_ptr.hbm [resolvable:$true] %s41
      %s43 = sshll.u32 [#allocation8], 4
      %s44 = int_to_ptr.vmem [resolvable:$true] %s43
      %49 = dma.hbm_to_vmem [thread:$0]  %s42, 48, %s44, [#allocation7], 16, 16, 1
    $region13: #{tpu_custom_call.1} parent=1 // pred_fallthru
      _
    // Predicated region
    $region14: #{tpu_custom_call.1} parent=1 // pred_check
      _
    $region15: #{tpu_custom_call.1} parent=1 // pred_check_branch
      %51 = sbr.rel (0) target = $region17
    $region16: #{tpu_custom_call.1} parent=1 // pred_region
      %53 = dma.done [#allocation4], 768
    $region17: #{tpu_custom_call.1} parent=1 // pred_fallthru
      _
    // Predicated region
    $region18: #{tpu_custom_call.1} parent=1 // pred_check
      _
    $region19: #{tpu_custom_call.1} parent=1 // pred_check_branch
      %55 = sbr.rel (0) target = $region21
    $region20: #{tpu_custom_call.1} parent=1 // pred_region
      %57 = dma.done [#allocation7], 6144
    $region21: #{tpu_custom_call.1} parent=1 // pred_fallthru
      _
    // Predicated region
    $region22: #{tpu_custom_call.1} parent=1 // pred_check
      _
    $region23: #{tpu_custom_call.1} parent=1 // pred_check_branch
      %59 = sbr.rel (0) target = $region25
    $region24: #{tpu_custom_call.1} parent=1 // pred_region
      %61 = dma.done [#allocation7], 48
    $region25: #{tpu_custom_call.1} parent=1 // pred_fallthru
      _
    %p62 = scmp.eq.s32.totalorder 0, 0
    // Predicated region
    $region26: #{tpu_custom_call.1} parent=1 // pred_check
      %p63 = pneg %p62
    $region27: #{tpu_custom_call.1} parent=1 // pred_check_branch
      %65 = sbr.rel (%p63) target = $region29
    $region28: #{tpu_custom_call.1} parent=1 // pred_region
      %66 = vst [vmem:[#allocation2] sm:$0xff] 0.0
      %67 = vst [vmem:[#allocation2 + $0x8] sm:$0xff] 0.0
      %68 = vst [vmem:[#allocation2 + $0x10] sm:$0xff] 0.0
      %69 = vst [vmem:[#allocation2 + $0x18] sm:$0xff] 0.0
      %70 = vst [vmem:[#allocation2 + $0x20] sm:$0xff] 0.0
      %71 = vst [vmem:[#allocation2 + $0x28] sm:$0xff] 0.0
    $region29: #{tpu_custom_call.1} parent=1 // pred_fallthru
      _
    %v72 = vld [vmem:[#allocation2] sm:$0xff]
    %v73 = vld [vmem:[#allocation2 + $0x8] sm:$0xff]
    %v74 = vld [vmem:[#allocation3] sm:$0xff]
    %v75 = vld [vmem:[#allocation3 + $0x8] sm:$0xff]
    %v76 = vld [vmem:[#allocation6] sm:$0xff]
    %v77 = vld [vmem:[#allocation6 + $0x8] sm:$0xff]
    %v78 = vld [vmem:[#allocation6 + $0x10] sm:$0xff]
    %v79 = vld [vmem:[#allocation6 + $0x18] sm:$0xff]
    %v80 = vld [vmem:[#allocation6 + $0x20] sm:$0xff]
    %v81 = vld [vmem:[#allocation6 + $0x28] sm:$0xff]
    %v82 = vld [vmem:[#allocation6 + $0x30] sm:$0xff]
    %v83 = vld [vmem:[#allocation6 + $0x38] sm:$0xff]
    %v84 = vld [vmem:[#allocation6 + $0x40] sm:$0xff]
    %v85 = vld [vmem:[#allocation6 + $0x48] sm:$0xff]
    %v86 = vld [vmem:[#allocation6 + $0x50] sm:$0xff]
    %v87 = vld [vmem:[#allocation6 + $0x58] sm:$0xff]
    %v88 = vld [vmem:[#allocation6 + $0x60] sm:$0xff]
    %v89 = vld [vmem:[#allocation6 + $0x68] sm:$0xff]
    %v90 = vld [vmem:[#allocation6 + $0x70] sm:$0xff]
    %v91 = vld [vmem:[#allocation6 + $0x78] sm:$0xff]
    %92 = vmatpush.msra.mxu0 %v91
    %93 = vmatpush.msra.mxu0 %v90
    %94 = vmatpush.msra.mxu0 %v89
    %95 = vmatpush.msra.mxu0 %v88
    %96 = vmatpush.msra.mxu0 %v87
    %97 = vmatpush.msra.mxu0 %v86
    %98 = vmatpush.msra.mxu0 %v85
    %99 = vmatpush.msra.mxu0 %v84
    %100 = vmatpush.msra.mxu0 %v83
    %101 = vmatpush.msra.mxu0 %v82
    %102 = vmatpush.msra.mxu0 %v81
    %103 = vmatpush.msra.mxu0 %v80
    %104 = vmatpush.msra.mxu0 %v79
    %105 = vmatpush.msra.mxu0 %v78
    %106 = vmatpush.msra.mxu0 %v77
    %107 = vmatpush.msra.mxu0 %v76
    %108 = vmatmul.f32.gmra.mxu0 %v74
    %v109 = vpop.f32.mrf.mxu0
    %v110 = vadd.f32 0.0, %v109
    %111 = vmatmul.f32.gmra.mxu0 %v75
    %v112 = vpop.f32.mrf.mxu0
    %v113 = vadd.f32 0.0, %v112
    %114 = vdwg.mxu0
    %v115 = vadd.f32 %v72, %v110
    %v116 = vadd.f32 %v73, %v113
    %117 = vst [vmem:[#allocation2] sm:$0xff] %v115
    %118 = vst [vmem:[#allocation2 + $0x8] sm:$0xff] %v116
    %s119 = scalar_lea.vmem [#allocation2], 16
    %v120 = vld [vmem:[%s119] sm:$0xff]
    %v121 = vld [vmem:[%s119 + $0x8] sm:$0xff]
    %s122 = scalar_lea.vmem [#allocation3], 16
    %v123 = vld [vmem:[%s122] sm:$0xff]
    %v124 = vld [vmem:[%s122 + $0x8] sm:$0xff]
    %s125 = scalar_lea.vmem [#allocation6], 128
    %v126 = vld [vmem:[%s125] sm:$0xff]
    %v127 = vld [vmem:[%s125 + $0x8] sm:$0xff]
    %v128 = vld [vmem:[%s125 + $0x10] sm:$0xff]
    %v129 = vld [vmem:[%s125 + $0x18] sm:$0xff]
    %v130 = vld [vmem:[%s125 + $0x20] sm:$0xff]
    %v131 = vld [vmem:[%s125 + $0x28] sm:$0xff]
    %v132 = vld [vmem:[%s125 + $0x30] sm:$0xff]
    %v133 = vld [vmem:[%s125 + $0x38] sm:$0xff]
    %v134 = vld [vmem:[%s125 + $0x40] sm:$0xff]
    %v135 = vld [vmem:[%s125 + $0x48] sm:$0xff]
    %v136 = vld [vmem:[%s125 + $0x50] sm:$0xff]
    %v137 = vld [vmem:[%s125 + $0x58] sm:$0xff]
    %v138 = vld [vmem:[%s125 + $0x60] sm:$0xff]
    %v139 = vld [vmem:[%s125 + $0x68] sm:$0xff]
    %v140 = vld [vmem:[%s125 + $0x70] sm:$0xff]
    %v141 = vld [vmem:[%s125 + $0x78] sm:$0xff]
    %142 = vmatpush.msra.mxu0 %v141
    %143 = vmatpush.msra.mxu0 %v140
    %144 = vmatpush.msra.mxu0 %v139
    %145 = vmatpush.msra.mxu0 %v138
    %146 = vmatpush.msra.mxu0 %v137
    %147 = vmatpush.msra.mxu0 %v136
    %148 = vmatpush.msra.mxu0 %v135
    %149 = vmatpush.msra.mxu0 %v134
    %150 = vmatpush.msra.mxu0 %v133
    %151 = vmatpush.msra.mxu0 %v132
    %152 = vmatpush.msra.mxu0 %v131
    %153 = vmatpush.msra.mxu0 %v130
    %154 = vmatpush.msra.mxu0 %v129
    %155 = vmatpush.msra.mxu0 %v128
    %156 = vmatpush.msra.mxu0 %v127
    %157 = vmatpush.msra.mxu0 %v126
    %158 = vmatmul.f32.gmra.mxu0 %v123
    %v159 = vpop.f32.mrf.mxu0
    %v160 = vadd.f32 0.0, %v159
    %161 = vmatmul.f32.gmra.mxu0 %v124
    %v162 = vpop.f32.mrf.mxu0
    %v163 = vadd.f32 0.0, %v162
    %164 = vdwg.mxu0
    %v165 = vadd.f32 %v120, %v160
    %v166 = vadd.f32 %v121, %v163
    %167 = vst [vmem:[%s119] sm:$0xff] %v165
    %168 = vst [vmem:[%s119 + $0x8] sm:$0xff] %v166
    %s169 = scalar_lea.vmem [#allocation2], 32
    %v170 = vld [vmem:[%s169] sm:$0xff]
    %v171 = vld [vmem:[%s169 + $0x8] sm:$0xff]
    %s172 = scalar_lea.vmem [#allocation3], 32
    %v173 = vld [vmem:[%s172] sm:$0xff]
    %v174 = vld [vmem:[%s172 + $0x8] sm:$0xff]
    %s175 = scalar_lea.vmem [#allocation6], 256
    %v176 = vld [vmem:[%s175] sm:$0xff]
    %v177 = vld [vmem:[%s175 + $0x8] sm:$0xff]
    %v178 = vld [vmem:[%s175 + $0x10] sm:$0xff]
    %v179 = vld [vmem:[%s175 + $0x18] sm:$0xff]
    %v180 = vld [vmem:[%s175 + $0x20] sm:$0xff]
    %v181 = vld [vmem:[%s175 + $0x28] sm:$0xff]
    %v182 = vld [vmem:[%s175 + $0x30] sm:$0xff]
    %v183 = vld [vmem:[%s175 + $0x38] sm:$0xff]
    %v184 = vld [vmem:[%s175 + $0x40] sm:$0xff]
    %v185 = vld [vmem:[%s175 + $0x48] sm:$0xff]
    %v186 = vld [vmem:[%s175 + $0x50] sm:$0xff]
    %v187 = vld [vmem:[%s175 + $0x58] sm:$0xff]
    %v188 = vld [vmem:[%s175 + $0x60] sm:$0xff]
    %v189 = vld [vmem:[%s175 + $0x68] sm:$0xff]
    %v190 = vld [vmem:[%s175 + $0x70] sm:$0xff]
    %v191 = vld [vmem:[%s175 + $0x78] sm:$0xff]
    %192 = vmatpush.msra.mxu0 %v191
    %193 = vmatpush.msra.mxu0 %v190
    %194 = vmatpush.msra.mxu0 %v189
    %195 = vmatpush.msra.mxu0 %v188
    %196 = vmatpush.msra.mxu0 %v187
    %197 = vmatpush.msra.mxu0 %v186
    %198 = vmatpush.msra.mxu0 %v185
    %199 = vmatpush.msra.mxu0 %v184
    %200 = vmatpush.msra.mxu0 %v183
    %201 = vmatpush.msra.mxu0 %v182
    %202 = vmatpush.msra.mxu0 %v181
    %203 = vmatpush.msra.mxu0 %v180
    %204 = vmatpush.msra.mxu0 %v179
    %205 = vmatpush.msra.mxu0 %v178
    %206 = vmatpush.msra.mxu0 %v177
    %207 = vmatpush.msra.mxu0 %v176
    %208 = vmatmul.f32.gmra.mxu0 %v173
    %v209 = vpop.f32.mrf.mxu0
    %v210 = vadd.f32 0.0, %v209
    %211 = vmatmul.f32.gmra.mxu0 %v174
    %v212 = vpop.f32.mrf.mxu0
    %v213 = vadd.f32 0.0, %v212
    %214 = vdwg.mxu0
    %v215 = vadd.f32 %v170, %v210
    %v216 = vadd.f32 %v171, %v213
    %217 = vst [vmem:[%s169] sm:$0xff] %v215
    %218 = vst [vmem:[%s169 + $0x8] sm:$0xff] %v216
    // Predicated region
    $region30: #{tpu_custom_call.1} parent=1 // pred_check
      %p219 = pneg %p62
    $region31: #{tpu_custom_call.1} parent=1 // pred_check_branch
      %221 = sbr.rel (%p219) target = $region33
    $region32: #{tpu_custom_call.1} parent=1 // pred_region
      %v222 = vld [vmem:[#allocation2] sm:$0xff]
      %v223 = vld [vmem:[#allocation2 + $0x8] sm:$0xff]
      %v224 = vld [vmem:[#allocation2 + $0x10] sm:$0xff]
      %v225 = vld [vmem:[#allocation2 + $0x18] sm:$0xff]
      %v226 = vld [vmem:[#allocation2 + $0x20] sm:$0xff]
      %v227 = vld [vmem:[#allocation2 + $0x28] sm:$0xff]
      %v228 = vld [vmem:[#allocation8] sm:$0x1]
      %v229 = vld [vmem:[#allocation8 + $0x1] sm:$0x1]
      %v230 = vld [vmem:[#allocation8 + $0x2] sm:$0x1]
      %v234 = vperm.slane %v228, 0
      %v235 = vperm.slane %v229, 0
      %v236 = vperm.slane %v230, 0
      %v240 = vadd.f32 %v222, %v234
      %v241 = vadd.f32 %v223, %v234
      %v242 = vadd.f32 %v224, %v235
      %v243 = vadd.f32 %v225, %v235
      %v244 = vadd.f32 %v226, %v236
      %v245 = vadd.f32 %v227, %v236
      %246 = vst [vmem:[#allocation9] sm:$0xff] %v240
      %247 = vst [vmem:[#allocation9 + $0x8] sm:$0xff] %v241
      %248 = vst [vmem:[#allocation9 + $0x10] sm:$0xff] %v242
      %249 = vst [vmem:[#allocation9 + $0x18] sm:$0xff] %v243
      %250 = vst [vmem:[#allocation9 + $0x20] sm:$0xff] %v244
      %251 = vst [vmem:[#allocation9 + $0x28] sm:$0xff] %v245
    $region33: #{tpu_custom_call.1} parent=1 // pred_fallthru
      _
    // Predicated region
    $region34: #{tpu_custom_call.1} parent=1 // pred_check
      _
    $region35: #{tpu_custom_call.1} parent=1 // pred_check_branch
      %253 = sbr.rel (0) target = $region37
    $region36: #{tpu_custom_call.1} parent=1 // pred_region
      %255 = vsyncadd [#allocation5], 0
      %s256 = sshll.u32 [#allocation9], 4
      %s257 = int_to_ptr.vmem [resolvable:$true] %s256
      %s258 = sshll.u32 %s3, 4
      %s259 = int_to_ptr.hbm [resolvable:$true] %s258
      %264 = dma.vmem_to_hbm [thread:$0]  %s257, 768, %s259, [#allocation5], 128, 128, 8
    $region37: #{tpu_custom_call.1} parent=1 // pred_fallthru
      _
    // Predicated region
    $region38: #{tpu_custom_call.1} parent=1 // pred_check
      _
    $region39: #{tpu_custom_call.1} parent=1 // pred_check_branch
      %266 = sbr.rel (0) target = $region41
    $region40: #{tpu_custom_call.1} parent=1 // pred_region
      %268 = dma.done [#allocation5], 768
    $region41: #{tpu_custom_call.1} parent=1 // pred_fallthru
      _
    %269 = vsyncpa [#allocation4], 1
    %270 = vsyncpa [#allocation7], 1
    %271 = vsyncpa [#allocation5], 1

</llo_original>
